<compile_context>
chip_gen: v6e
topology: v6e:2x2x1
jax: 0.10.0
libtpu: 0.0.40
codegen_flags: <defaults>
</compile_context>

<pallas_src>
import functools

import jax
import jax.numpy as jnp
from jax import lax
from jax.experimental import pallas as pl
from jax.experimental.pallas import tpu as pltpu

_ONES_PAD = 8  # all-ones rows appended to vc for the MXU row-sum trick


def _tpu_generation():
    """Best-effort TPU generation (5, 6, 7, ...); defaults to 6."""
    try:
        kind = jax.devices()[0].device_kind.lower()
    except Exception:
        return 6
    for g in (7, 6, 5, 4):
        if f"v{g}" in kind:
            return g
    return 6


def _proj_kernel(x_ref, wp_ref, bp_ref, wc_ref, bc_ref, vp_ref, vce_ref):
    """1x1 convs as channel matmuls for one [c, ts] spatial tile.

    vp_ref:  [cq, ts]          bf16
    vce_ref: [c + ONES_PAD, ts] bf16; trailing rows are ones (row-sum trick).
    """
    x16 = x_ref[...].astype(jnp.bfloat16)
    vp = jnp.dot(wp_ref[...], x16, preferred_element_type=jnp.float32) + bp_ref[...]
    vc = jnp.dot(wc_ref[...], x16, preferred_element_type=jnp.float32) + bc_ref[...]
    vp_ref[...] = vp.astype(jnp.bfloat16)
    pad = vce_ref.shape[0] - vc.shape[0]
    vce_ref[...] = jnp.concatenate(
        [vc.astype(jnp.bfloat16),
         jnp.ones((pad, vc.shape[1]), dtype=jnp.bfloat16)], axis=0)


def _attn_kernel(vp_ref, vce_ref, x_ref, alpha_ref, o_ref, *, exp_in_bf16):
    # vp_ref:  [cq, hw]        bf16 (resident across query tiles)
    # vce_ref: [c + PAD, hw]   bf16 (vc with trailing all-ones rows)
    # x_ref:   [c, tq]         f32  residual tile
    # o_ref:   [c, tq]
    c, tq = o_ref.shape
    q = pl.program_id(1)
    if tq % 128 == 0:
        q_off = pl.multiple_of(q * tq, 128)
    else:
        q_off = q * tq

    vp_all = vp_ref[...]                                   # [cq, hw]
    vp_q = vp_ref[:, pl.ds(q_off, tq)]                     # [cq, tq]

    # s_t[k, j] = <vp[:, k], vp[:, q_off + j]>  (keys on sublanes, queries on
    # lanes), f32 MXU accumulation.
    s_t = lax.dot_general(vp_all, vp_q, (((0,), (0,)), ((), ())),
                          preferred_element_type=jnp.float32)    # [hw, tq]

    # Softmax over keys (axis 0).  Probabilities in bf16; exp runs in bf16 on
    # the EUP on v6e/v7x, in f32 on v5e (no bf16 EUP there).
    m = jnp.max(s_t, axis=0, keepdims=True)                      # [1, tq]
    if exp_in_bf16:
        e = jnp.exp((s_t - m).astype(jnp.bfloat16))              # [hw, tq] bf16
    else:
        e = jnp.exp(s_t - m).astype(jnp.bfloat16)

    # av plus an f32-accumulated key-sum (the trailing ones rows) in one MXU op.
    av_ext = lax.dot_general(vce_ref[...], e, (((1,), (0,)), ((), ())),
                             preferred_element_type=jnp.float32)  # [c+PAD, tq]
    av = av_ext[:c, :]
    l = av_ext[c:c + 1, :]                                        # [1, tq]

    # alpha folded into the [1, tq] normalizer; approx reciprocal rides the EUP.
    scale = alpha_ref[0] * pl.reciprocal(l, approx=True)
    o_ref[...] = (av * scale + x_ref[...]).astype(o_ref.dtype)


def _main_vmem_bytes(c, cq, c_ext, hw, tq, exp_in_bf16):
    e_bytes = 2 if exp_in_bf16 else 4
    return (2 * cq * hw * 2          # vp bf16 (double-buffered block)
            + 2 * c_ext * hw * 2     # vc (+ones) bf16 (double-buffered block)
            + 2 * c * tq * 4         # x residual tile f32
            + 2 * c * tq * 4         # out tile f32
            + hw * tq * 4            # s_t f32 logits
            + hw * tq * e_bytes      # probability slab
            + hw * tq * 4            # transient (s_t - m) / compiler temps
            + c_ext * tq * 4)        # av (+ row-sum) f32


def crack_attention(x, wp, bp, wc, bc, alpha, *, tq=None):
    """x: [bs, c, h, w] f32; wp: [c//4, c]; bp: [c//4]; wc: [c, c]; bc: [c];
    alpha: [1].  Returns [bs, c, h, w]."""
    bs, c, h, w = x.shape
    hw = h * w
    cq = wp.shape[0]
    c_ext = c + _ONES_PAD

    gen = _tpu_generation()
    exp_in_bf16 = gen >= 6                       # v5e: keep f32 exp (no bf16 EUP)
    vmem_cap = (56 if gen >= 7 else 100) * 1024 * 1024

    # Query-tile size: caps the [hw, tq] score slab.  Must divide hw and be
    # lane-aligned (128) unless it covers the whole spatial extent.
    if tq is None:
        if hw <= 512 or hw % 128 != 0:
            # TODO(synk): large hw not divisible by 128 should use a masked /
            # key-tiled (flash-style) inner loop instead of one monolithic tile.
            tq = hw
        else:
            cands = (512, 256, 128) if gen >= 7 else (2048, 1024, 512, 256, 128)
            tq = 128
            budget = vmem_cap - 8 * 1024 * 1024
            for cand in cands:
                if hw % cand == 0 and _main_vmem_bytes(
                        c, cq, c_ext, hw, cand, exp_in_bf16) <= budget:
                    tq = cand
                    break
    assert hw % tq == 0, "query tile must divide h*w"
    assert tq == hw or tq % 128 == 0, "partial query tiles must be 128-aligned"
    nq = hw // tq

    x_flat = x.reshape(bs, c, hw)
    wp_bf = wp.astype(jnp.bfloat16)
    wc_bf = wc.astype(jnp.bfloat16)
    bp2 = bp.reshape(cq, 1).astype(jnp.float32)
    bc2 = bc.reshape(c, 1).astype(jnp.float32)
    alpha1 = alpha.reshape(1).astype(jnp.float32)

    # ---- prologue: 1x1 convs, bf16 vp / vc(+ones) to HBM ------------------
    vp_all, vc_ext = pl.pallas_call(
        _proj_kernel,
        out_shape=(jax.ShapeDtypeStruct((bs, cq, hw), jnp.bfloat16),
                   jax.ShapeDtypeStruct((bs, c_ext, hw), jnp.bfloat16)),
        grid_spec=pltpu.PrefetchScalarGridSpec(
            num_scalar_prefetch=0,
            grid=(bs, nq),
            in_specs=[
                pl.BlockSpec((None, c, tq), lambda b, s: (b, 0, s)),   # x tile
                pl.BlockSpec((cq, c), lambda b, s: (0, 0)),            # Wp bf16
                pl.BlockSpec((cq, 1), lambda b, s: (0, 0)),            # bp
                pl.BlockSpec((c, c), lambda b, s: (0, 0)),             # Wc bf16
                pl.BlockSpec((c, 1), lambda b, s: (0, 0)),             # bc
            ],
            out_specs=[
                pl.BlockSpec((None, cq, tq), lambda b, s: (b, 0, s)),
                pl.BlockSpec((None, c_ext, tq), lambda b, s: (b, 0, s)),
            ],
        ),
        compiler_params=pltpu.CompilerParams(
            dimension_semantics=("parallel", "parallel")),
    )(x_flat, wp_bf, bp2, wc_bf, bc2)

    # ---- main: query-tiled attention ---------------------------------------
    est = _main_vmem_bytes(c, cq, c_ext, hw, tq, exp_in_bf16)
    vmem_limit = min(vmem_cap, max(est + 4 * 1024 * 1024, 32 * 1024 * 1024))

    kernel = functools.partial(_attn_kernel, exp_in_bf16=exp_in_bf16)
    out_flat = pl.pallas_call(
        kernel,
        out_shape=jax.ShapeDtypeStruct((bs, c, hw), x.dtype),
        grid_spec=pltpu.PrefetchScalarGridSpec(
            num_scalar_prefetch=0,
            grid=(bs, nq),
            in_specs=[
                # vp / vc(+ones): full spatial slabs, constant across q tiles.
                pl.BlockSpec((None, cq, hw), lambda b, q: (b, 0, 0)),
                pl.BlockSpec((None, c_ext, hw), lambda b, q: (b, 0, 0)),
                # residual x: only the current query tile.
                pl.BlockSpec((None, c, tq), lambda b, q: (b, 0, q)),
                pl.BlockSpec(memory_space=pltpu.MemorySpace.SMEM),      # alpha
            ],
            out_specs=pl.BlockSpec((None, c, tq), lambda b, q: (b, 0, q)),
        ),
        # No state is carried across the query axis anymore, so both axes are
        # megacore-parallel (helps v7x even at bs == 1).
        compiler_params=pltpu.CompilerParams(
            dimension_semantics=("parallel", "parallel"),
            vmem_limit_bytes=vmem_limit),
    )(vp_all, vc_ext, x_flat, alpha1)

    return out_flat.reshape(bs, c, h, w)


def crack_attention_ref(x, wp, bp, wc, bc, alpha):
    """Pure-JAX f32 reference mirroring the PyTorch forward."""
    bs, c, h, w = x.shape
    hw = h * w
    xf = x.reshape(bs, c, hw)
    vp = jnp.einsum('oc,bci->boi', wp, xf) + bp[None, :, None]     # [bs, cq, hw]
    s = jnp.einsum('bci,bcj->bij', vp, vp)                         # [bs, hw, hw]
    attn = jax.nn.softmax(s, axis=-1)
    vc = jnp.einsum('oc,bci->boi', wc, xf) + bc[None, :, None]     # [bs, c, hw]
    av = jnp.einsum('bcj,bij->bci', vc, attn)                      # [bs, c, hw]
    out = alpha.reshape(()) * av + xf
    return out.reshape(bs, c, h, w)


if __name__ == "__main__":
    # Small shapes: batch=2, channels=8 (so c//4=2), spatial 16x16 (hw=256).
    bs, c, h, w = 2, 8, 16, 16
    cq = c // 4

    key = jax.random.PRNGKey(0)
    k_x, k_wp, k_bp, k_wc, k_bc = jax.random.split(key, 5)

    x = jax.random.normal(k_x, (bs, c, h, w), dtype=jnp.float32)
    # Conv2d(in, out, 1) weights [out, in, 1, 1] collapsed to [out, in].
    wp = jax.random.normal(k_wp, (cq, c), dtype=jnp.float32) * 0.1
    bp = jax.random.normal(k_bp, (cq,), dtype=jnp.float32) * 0.1
    wc = jax.random.normal(k_wc, (c, c), dtype=jnp.float32) * 0.1
    bc = jax.random.normal(k_bc, (c,), dtype=jnp.float32) * 0.1
    # nn.Parameter(torch.zeros(1)) -> alpha init is 0; use a nonzero value so
    # the attention path is actually exercised numerically.
    alpha = jnp.array([0.5], dtype=jnp.float32)

    # tq=128 forces 2 query tiles for hw=256, exercising the tiled path.
    out = crack_attention(x, wp, bp, wc, bc, alpha, tq=128)
    out = jax.block_until_ready(out)

    ref = crack_attention_ref(x, wp, bp, wc, bc, alpha)
    assert out.shape == (bs, c, h, w)
    # bf16 MXU operands / bf16 probabilities + approx reciprocal -> relaxed
    # tolerance vs the f32 reference.
    assert jnp.allclose(out, ref, atol=2e-2, rtol=2e-2), "mismatch vs reference"

    print("KERNEL_OK")
</pallas_src>

<mosaic_0001>
module attributes {stable_mosaic.version = 11 : i64} {
  func.func @_proj_kernel(%arg0: i32, %arg1: i32, %arg2: memref<1x8x128xf32, #tpu.memory_space<vmem>>, %arg3: memref<2x8xbf16, #tpu.memory_space<vmem>>, %arg4: memref<2x1xf32, #tpu.memory_space<vmem>>, %arg5: memref<8x8xbf16, #tpu.memory_space<vmem>>, %arg6: memref<8x1xf32, #tpu.memory_space<vmem>>, %arg7: memref<1x2x128xbf16, #tpu.memory_space<vmem>>, %arg8: memref<1x16x128xbf16, #tpu.memory_space<vmem>>) attributes {dimension_semantics = [#tpu.dimension_semantics<parallel>, #tpu.dimension_semantics<parallel>], iteration_bounds = array<i64: 2, 2>, scalar_prefetch = 0 : i64, scratch_operands = 0 : i64, tpu.core_type = #tpu.core_type<tc>, window_params = [{transform_indices = @transform_0, window_bounds = array<i64: 1, 8, 128>}, {pipeline_mode = #tpu.pipeline_mode<synchronous>, transform_indices = @transform_1, window_bounds = array<i64: 2, 8>}, {pipeline_mode = #tpu.pipeline_mode<synchronous>, transform_indices = @transform_2, window_bounds = array<i64: 2, 1>}, {pipeline_mode = #tpu.pipeline_mode<synchronous>, transform_indices = @transform_3, window_bounds = array<i64: 8, 8>}, {pipeline_mode = #tpu.pipeline_mode<synchronous>, transform_indices = @transform_4, window_bounds = array<i64: 8, 1>}, {transform_indices = @transform_5, window_bounds = array<i64: 1, 2, 128>}, {transform_indices = @transform_6, window_bounds = array<i64: 1, 16, 128>}]} {
    %c0 = arith.constant 0 : index
    %c0_0 = arith.constant 0 : index
    %c0_1 = arith.constant 0 : index
    %0 = vector.load %arg2[%c0, %c0_0, %c0_1] : memref<1x8x128xf32, #tpu.memory_space<vmem>>, vector<1x8x128xf32>
    %1 = vector.shape_cast %0 : vector<1x8x128xf32> to vector<8x128xf32>
    %2 = arith.truncf %1 : vector<8x128xf32> to vector<8x128xbf16>
    %c0_2 = arith.constant 0 : index
    %c0_3 = arith.constant 0 : index
    %3 = vector.load %arg3[%c0_2, %c0_3] : memref<2x8xbf16, #tpu.memory_space<vmem>>, vector<2x8xbf16>
    %cst = arith.constant dense<0.000000e+00> : vector<2x128xf32>
    %4 = tpu.matmul %3, %2, %cst {dimension_numbers = #tpu.dot_dimension_numbers<[1], [0], [0], [1], [0, 0, 1, 1], [], []>} : vector<2x8xbf16>, vector<8x128xbf16>, vector<2x128xf32> -> vector<2x128xf32>
    %c0_4 = arith.constant 0 : index
    %c0_5 = arith.constant 0 : index
    %5 = vector.load %arg4[%c0_4, %c0_5] : memref<2x1xf32, #tpu.memory_space<vmem>>, vector<2x1xf32>
    %6 = vector.broadcast %5 : vector<2x1xf32> to vector<2x128xf32>
    %7 = arith.addf %4, %6 : vector<2x128xf32>
    %c0_6 = arith.constant 0 : index
    %c0_7 = arith.constant 0 : index
    %8 = vector.load %arg5[%c0_6, %c0_7] : memref<8x8xbf16, #tpu.memory_space<vmem>>, vector<8x8xbf16>
    %cst_8 = arith.constant dense<0.000000e+00> : vector<8x128xf32>
    %9 = tpu.matmul %8, %2, %cst_8 {dimension_numbers = #tpu.dot_dimension_numbers<[1], [0], [0], [1], [0, 0, 1, 1], [], []>} : vector<8x8xbf16>, vector<8x128xbf16>, vector<8x128xf32> -> vector<8x128xf32>
    %c0_9 = arith.constant 0 : index
    %c0_10 = arith.constant 0 : index
    %10 = vector.load %arg6[%c0_9, %c0_10] : memref<8x1xf32, #tpu.memory_space<vmem>>, vector<8x1xf32>
    %11 = vector.broadcast %10 : vector<8x1xf32> to vector<8x128xf32>
    %12 = arith.addf %9, %11 : vector<8x128xf32>
    %13 = arith.truncf %7 : vector<2x128xf32> to vector<2x128xbf16>
    %c0_11 = arith.constant 0 : index
    %c0_12 = arith.constant 0 : index
    %c0_13 = arith.constant 0 : index
    %14 = vector.load %arg7[%c0_11, %c0_12, %c0_13] : memref<1x2x128xbf16, #tpu.memory_space<vmem>>, vector<1x2x128xbf16>
    %15 = vector.shape_cast %14 : vector<1x2x128xbf16> to vector<2x128xbf16>
    %16 = vector.shape_cast %13 : vector<2x128xbf16> to vector<1x2x128xbf16>
    tpu.vector_store %arg7[%c0_11, %c0_12, %c0_13], %16 {strides = array<i32>} : memref<1x2x128xbf16, #tpu.memory_space<vmem>>, vector<1x2x128xbf16>,
    %17 = arith.truncf %12 : vector<8x128xf32> to vector<8x128xbf16>
    %cst_14 = arith.constant 1.000000e+00 : bf16
    %18 = vector.broadcast %cst_14 : bf16 to vector<8x128xbf16>
    %19 = tpu.concatenate %17, %18 in 0 : vector<8x128xbf16>, vector<8x128xbf16> -> vector<16x128xbf16>
    %c0_15 = arith.constant 0 : index
    %c0_16 = arith.constant 0 : index
    %c0_17 = arith.constant 0 : index
    %20 = vector.load %arg8[%c0_15, %c0_16, %c0_17] : memref<1x16x128xbf16, #tpu.memory_space<vmem>>, vector<1x16x128xbf16>
    %21 = vector.shape_cast %20 : vector<1x16x128xbf16> to vector<16x128xbf16>
    %22 = vector.shape_cast %19 : vector<16x128xbf16> to vector<1x16x128xbf16>
    tpu.vector_store %arg8[%c0_15, %c0_16, %c0_17], %22 {strides = array<i32>} : memref<1x16x128xbf16, #tpu.memory_space<vmem>>, vector<1x16x128xbf16>,
    return
  }
  func.func @transform_0(%arg0: i32, %arg1: i32) -> (i32, i32, i32) {
    %c0_i32 = arith.constant 0 : i32
    %c0_i32_0 = arith.constant 0 : i32
    return %arg0, %c0_i32, %arg1 : i32, i32, i32
  }
  func.func @transform_1(%arg0: i32, %arg1: i32) -> (i32, i32) {
    %c0_i32 = arith.constant 0 : i32
    %c0_i32_0 = arith.constant 0 : i32
    %c0_i32_1 = arith.constant 0 : i32
    return %c0_i32, %c0_i32_0 : i32, i32
  }
  func.func @transform_2(%arg0: i32, %arg1: i32) -> (i32, i32) {
    %c0_i32 = arith.constant 0 : i32
    %c0_i32_0 = arith.constant 0 : i32
    %c0_i32_1 = arith.constant 0 : i32
    return %c0_i32, %c0_i32_0 : i32, i32
  }
  func.func @transform_3(%arg0: i32, %arg1: i32) -> (i32, i32) {
    %c0_i32 = arith.constant 0 : i32
    %c0_i32_0 = arith.constant 0 : i32
    %c0_i32_1 = arith.constant 0 : i32
    return %c0_i32, %c0_i32_0 : i32, i32
  }
  func.func @transform_4(%arg0: i32, %arg1: i32) -> (i32, i32) {
    %c0_i32 = arith.constant 0 : i32
    %c0_i32_0 = arith.constant 0 : i32
    %c0_i32_1 = arith.constant 0 : i32
    return %c0_i32, %c0_i32_0 : i32, i32
  }
  func.func @transform_5(%arg0: i32, %arg1: i32) -> (i32, i32, i32) {
    %c0_i32 = arith.constant 0 : i32
    %c0_i32_0 = arith.constant 0 : i32
    return %arg0, %c0_i32, %arg1 : i32, i32, i32
  }
  func.func @transform_6(%arg0: i32, %arg1: i32) -> (i32, i32, i32) {
    %c0_i32 = arith.constant 0 : i32
    %c0_i32_0 = arith.constant 0 : i32
    return %arg0, %c0_i32, %arg1 : i32, i32, i32
  }
}

</mosaic_0001>

<llo_original>
// kernel: tpu_custom_call.1
$region0: #{tpu_custom_call.1}
  #allocation0 [shape = 'u32[]', space=smem, size = 0x4, offset = 0x4, fixed_abs, tag = 'smem constant byte address 0x4 - core index']
  #allocation1 [shape = 'u32[144,128]{1,0:T(1,128)}', space=vmem, size = 0x12000, scoped, tag = 'internal scratch']
  %s0 = inlined_call_operand.hbm [shape: f32[2,8,256], index: 0, kind: input, shape index: {}]
  %s1 = inlined_call_operand.vmem [shape: bf16[2,8], index: 1, kind: input, shape index: {}]
  %s2 = inlined_call_operand.vmem [shape: f32[2,1], index: 2, kind: input, shape index: {}]
  %s3 = inlined_call_operand.vmem [shape: bf16[8,8], index: 3, kind: input, shape index: {}]
  %s4 = inlined_call_operand.vmem [shape: f32[8,1], index: 4, kind: input, shape index: {}]
  %s5 = inlined_call_operand.hbm [shape: bf16[2,2,256], index: 5, kind: output, shape index: {0}]
  %s6 = inlined_call_operand.hbm [shape: bf16[2,16,256], index: 6, kind: output, shape index: {1}]
  %7 = xla_tuple %s5, %s6
  %s8 = sld [smem:[#allocation0]]
  $region65: #{tpu_custom_call.1} parent=0
    _
  %s10 = ssub.s32 1, %s8
  %s11 = scalar_select 0, %s10, %s8
  $region1: #{tpu_custom_call.1} parent=0
    #allocation2 [shape = 'u8[8192]{0}', space=vmem, size = 0x2000, scoped, tag = 'input window, operand 0']
    #allocation3 [shape = 's32[2]{0}', space=sflag, size = 0x8, scoped, tag = 'scoped memory for tpu_custom_call.1']
    #allocation4 [shape = 's32[2]{0}', space=sflag, size = 0x8, scoped, tag = 'scoped memory for tpu_custom_call.1']
    #allocation5 [shape = 'u8[1024]{0}', space=vmem, size = 0x400, scoped, tag = 'output window, operand 0']
    #allocation6 [shape = 'u8[8192]{0}', space=vmem, size = 0x2000, scoped, tag = 'output window, operand 1']
    #allocation7 [shape = 's32[2]{0}', space=sflag, size = 0x8, scoped, tag = 'scoped memory for tpu_custom_call.1']
    %12 = vsyncpa [#allocation3], 0
    %s13 = scalar_lea.sflag [#allocation3], 1
    %14 = vsyncpa %s13, 0
    %15 = vsyncpa [#allocation4], 0
    %s16 = scalar_lea.sflag [#allocation4], 1
    %17 = vsyncpa %s16, 0
    %18 = vsyncpa [#allocation7], 0
    %s19 = scalar_lea.sflag [#allocation7], 1
    %20 = vsyncpa %s19, 0
    loop: start=0, step=1, limit=6
    $region2: #{tpu_custom_call.1} parent=1 // loop_pre_header
      _
    $region3: #{tpu_custom_call.1} parent=1 // loop_header
      %s22 = sphi 0, %s26
      %p23 = scmp.ge.s32.totalorder %s22, 6
      %s29 = sphi 0, %s41
      %s30 = sphi 0, %s37
      %s31 = sphi 0, %s29
      %s32 = sphi 0, %s30
      %s33 = sphi 0, %s31
      %s34 = sphi 0, %s32
      %s46 = sphi 0, %s48
      %s49 = sphi 0, %s46
      %s50 = sphi 0, %s49
      %s66 = sphi 0, %s50
      %s70 = sphi 0, %s70
      %s72 = sphi 0, %s70
      %s73 = sphi 0, %s72
      %s87 = sphi 0, %s73
      %s91 = sphi 0, %s91
      %s93 = sphi 0, %s91
      %s94 = sphi 0, %s93
      %s108 = sphi 0, %s94
      %s112 = sphi 0, %s112
      %s114 = sphi 0, %s112
      %s115 = sphi 0, %s114
      %s129 = sphi 0, %s115
      %s133 = sphi 0, %s133
      %s135 = sphi 0, %s133
      %s136 = sphi 0, %s135
      %s150 = sphi 0, %s136
      %s158 = sphi 0, %s160
      %s161 = sphi 0, %s158
      %s162 = sphi 0, %s161
      %s178 = sphi 0, %s162
      %s186 = sphi 0, %s188
      %s189 = sphi 0, %s186
      %s190 = sphi 0, %s189
      %s206 = sphi 0, %s190
    $region4: #{tpu_custom_call.1} parent=1 // loop_header_branch
      %25 = sbr.rel (%p23) target = $region8
    $region5: #{tpu_custom_call.1} parent=1 // loop_body
      %s27 = ssub.s32 %s22, 1
      %s28 = ssub.s32 %s22, 2
      %s35 = sadd.s32 1, %s30
      %p36 = scmp.ge.s32.totalorder %s35, 2
      %s37 = scalar_select %p36, 0, %s35
      %s38 = sadd.s32 1, %s29
      %s39 = scalar_select %p36, %s38, %s29
      %p40 = scmp.ge.s32.totalorder %s39, 2
      %s41 = scalar_select %p40, 0, %s39
      %s42 = ssub.s32 %s29, %s41
      %s43 = ssub.s32 %s30, %s37
      %s44 = sor.u32 %s42, %s43
      %p45 = scmp.eq.s32.totalorder %s44, 0
      %s47 = sadd.s32 %s46, 1
      %s48 = scalar_select %p45, %s46, %s47
      %p51 = pneg %p45
      %p52 = scmp.eq.s32.totalorder %s22, 3
      %p53 = por %p51, %p52
      %p54 = scmp.ne.s32.totalorder %s46, %s49
      %p55 = scmp.eq.s32.totalorder %s22, 0
      %p56 = por %p54, %p55
      %p57 = scmp.ne.s32.totalorder %s46, %s49
      %p58 = scmp.eq.s32.totalorder %s27, 3
      %p59 = por %p57, %p58
      %p60 = scmp.ne.s32.totalorder %s49, %s50
      %p61 = scmp.eq.s32.totalorder %s27, 0
      %p62 = por %p60, %p61
      %p63 = scmp.ne.s32.totalorder %s49, %s50
      %p64 = scmp.eq.s32.totalorder %s28, 3
      %p65 = por %p63, %p64
      %p67 = scmp.ne.s32.totalorder %s50, %s66
      %p68 = scmp.eq.s32.totalorder %s28, 0
      %p69 = por %p67, %p68
      %s71 = sadd.s32 %s70, 1
      %p74 = scmp.eq.s32.totalorder %s22, 3
      %p75 = scmp.ne.s32.totalorder %s70, %s72
      %p76 = scmp.eq.s32.totalorder %s22, 0
      %p77 = por %p75, %p76
      %p78 = scmp.ne.s32.totalorder %s70, %s72
      %p79 = scmp.eq.s32.totalorder %s27, 3
      %p80 = por %p78, %p79
      %p81 = scmp.ne.s32.totalorder %s72, %s73
      %p82 = scmp.eq.s32.totalorder %s27, 0
      %p83 = por %p81, %p82
      %p84 = scmp.ne.s32.totalorder %s72, %s73
      %p85 = scmp.eq.s32.totalorder %s28, 3
      %p86 = por %p84, %p85
      %p88 = scmp.ne.s32.totalorder %s73, %s87
      %p89 = scmp.eq.s32.totalorder %s28, 0
      %p90 = por %p88, %p89
      %s92 = sadd.s32 %s91, 1
      %p95 = scmp.eq.s32.totalorder %s22, 3
      %p96 = scmp.ne.s32.totalorder %s91, %s93
      %p97 = scmp.eq.s32.totalorder %s22, 0
      %p98 = por %p96, %p97
      %p99 = scmp.ne.s32.totalorder %s91, %s93
      %p100 = scmp.eq.s32.totalorder %s27, 3
      %p101 = por %p99, %p100
      %p102 = scmp.ne.s32.totalorder %s93, %s94
      %p103 = scmp.eq.s32.totalorder %s27, 0
      %p104 = por %p102, %p103
      %p105 = scmp.ne.s32.totalorder %s93, %s94
      %p106 = scmp.eq.s32.totalorder %s28, 3
      %p107 = por %p105, %p106
      %p109 = scmp.ne.s32.totalorder %s94, %s108
      %p110 = scmp.eq.s32.totalorder %s28, 0
      %p111 = por %p109, %p110
      %s113 = sadd.s32 %s112, 1
      %p116 = scmp.eq.s32.totalorder %s22, 3
      %p117 = scmp.ne.s32.totalorder %s112, %s114
      %p118 = scmp.eq.s32.totalorder %s22, 0
      %p119 = por %p117, %p118
      %p120 = scmp.ne.s32.totalorder %s112, %s114
      %p121 = scmp.eq.s32.totalorder %s27, 3
      %p122 = por %p120, %p121
      %p123 = scmp.ne.s32.totalorder %s114, %s115
      %p124 = scmp.eq.s32.totalorder %s27, 0
      %p125 = por %p123, %p124
      %p126 = scmp.ne.s32.totalorder %s114, %s115
      %p127 = scmp.eq.s32.totalorder %s28, 3
      %p128 = por %p126, %p127
      %p130 = scmp.ne.s32.totalorder %s115, %s129
      %p131 = scmp.eq.s32.totalorder %s28, 0
      %p132 = por %p130, %p131
      %s134 = sadd.s32 %s133, 1
      %p137 = scmp.eq.s32.totalorder %s22, 3
      %p138 = scmp.ne.s32.totalorder %s133, %s135
      %p139 = scmp.eq.s32.totalorder %s22, 0
      %p140 = por %p138, %p139
      %p141 = scmp.ne.s32.totalorder %s133, %s135
      %p142 = scmp.eq.s32.totalorder %s27, 3
      %p143 = por %p141, %p142
      %p144 = scmp.ne.s32.totalorder %s135, %s136
      %p145 = scmp.eq.s32.totalorder %s27, 0
      %p146 = por %p144, %p145
      %p147 = scmp.ne.s32.totalorder %s135, %s136
      %p148 = scmp.eq.s32.totalorder %s28, 3
      %p149 = por %p147, %p148
      %p151 = scmp.ne.s32.totalorder %s136, %s150
      %p152 = scmp.eq.s32.totalorder %s28, 0
      %p153 = por %p151, %p152
      %s154 = ssub.s32 %s29, %s41
      %s155 = ssub.s32 %s30, %s37
      %s156 = sor.u32 %s154, %s155
      %p157 = scmp.eq.s32.totalorder %s156, 0
      %s159 = sadd.s32 %s158, 1
      %s160 = scalar_select %p157, %s158, %s159
      %p163 = pneg %p157
      %p164 = scmp.eq.s32.totalorder %s22, 3
      %p165 = por %p163, %p164
      %p166 = scmp.ne.s32.totalorder %s158, %s161
      %p167 = scmp.eq.s32.totalorder %s22, 0
      %p168 = por %p166, %p167
      %p169 = scmp.ne.s32.totalorder %s158, %s161
      %p170 = scmp.eq.s32.totalorder %s27, 3
      %p171 = por %p169, %p170
      %p172 = scmp.ne.s32.totalorder %s161, %s162
      %p173 = scmp.eq.s32.totalorder %s27, 0
      %p174 = por %p172, %p173
      %p175 = scmp.ne.s32.totalorder %s161, %s162
      %p176 = scmp.eq.s32.totalorder %s28, 3
      %p177 = por %p175, %p176
      %p179 = scmp.ne.s32.totalorder %s162, %s178
      %p180 = scmp.eq.s32.totalorder %s28, 0
      %p181 = por %p179, %p180
      %s182 = ssub.s32 %s29, %s41
      %s183 = ssub.s32 %s30, %s37
      %s184 = sor.u32 %s182, %s183
      %p185 = scmp.eq.s32.totalorder %s184, 0
      %s187 = sadd.s32 %s186, 1
      %s188 = scalar_select %p185, %s186, %s187
      %p191 = pneg %p185
      %p192 = scmp.eq.s32.totalorder %s22, 3
      %p193 = por %p191, %p192
      %p194 = scmp.ne.s32.totalorder %s186, %s189
      %p195 = scmp.eq.s32.totalorder %s22, 0
      %p196 = por %p194, %p195
      %p197 = scmp.ne.s32.totalorder %s186, %s189
      %p198 = scmp.eq.s32.totalorder %s27, 3
      %p199 = por %p197, %p198
      %p200 = scmp.ne.s32.totalorder %s189, %s190
      %p201 = scmp.eq.s32.totalorder %s27, 0
      %p202 = por %p200, %p201
      %p203 = scmp.ne.s32.totalorder %s189, %s190
      %p204 = scmp.eq.s32.totalorder %s28, 3
      %p205 = por %p203, %p204
      %p207 = scmp.ne.s32.totalorder %s190, %s206
      %p208 = scmp.eq.s32.totalorder %s28, 0
      %p209 = por %p207, %p208
      %p210 = scmp.le.s32.totalorder 1, %s22
      %p211 = scmp.lt.s32.totalorder %s22, 5
      %p212 = pnand %p210, %p211
      %p213 = pneg %p212
      // Predicated region
      $region9: #{tpu_custom_call.1} parent=5 // pred_check
        _
      $region10: #{tpu_custom_call.1} parent=5 // pred_check_branch
        %215 = sbr.rel (%p212) target = $region12
      $region11: #{tpu_custom_call.1} parent=5 // pred_region
        %s216 = ssub.s32 %s22, 1
        // Predicated region
        $region13: #{tpu_custom_call.1} parent=11 // pred_check
          %p217 = pneg %p83
        $region14: #{tpu_custom_call.1} parent=11 // pred_check_branch
          %219 = sbr.rel (%p217) target = $region16
        $region15: #{tpu_custom_call.1} parent=11 // pred_region
          _
        $region16: #{tpu_custom_call.1} parent=11 // pred_fallthru
          _
        // Predicated region
        $region17: #{tpu_custom_call.1} parent=11 // pred_check
          %p220 = pneg %p104
        $region18: #{tpu_custom_call.1} parent=11 // pred_check_branch
          %222 = sbr.rel (%p220) target = $region20
        $region19: #{tpu_custom_call.1} parent=11 // pred_region
          _
        $region20: #{tpu_custom_call.1} parent=11 // pred_fallthru
          _
        // Predicated region
        $region21: #{tpu_custom_call.1} parent=11 // pred_check
          %p223 = pneg %p125
        $region22: #{tpu_custom_call.1} parent=11 // pred_check_branch
          %225 = sbr.rel (%p223) target = $region24
        $region23: #{tpu_custom_call.1} parent=11 // pred_region
          _
        $region24: #{tpu_custom_call.1} parent=11 // pred_fallthru
          _
        // Predicated region
        $region25: #{tpu_custom_call.1} parent=11 // pred_check
          %p226 = pneg %p146
        $region26: #{tpu_custom_call.1} parent=11 // pred_check_branch
          %228 = sbr.rel (%p226) target = $region28
        $region27: #{tpu_custom_call.1} parent=11 // pred_region
          _
        $region28: #{tpu_custom_call.1} parent=11 // pred_fallthru
          _
      $region12: #{tpu_custom_call.1} parent=5 // pred_fallthru
        _
      %p229 = scmp.lt.s32.totalorder %s22, 4
      // Predicated region
      $region29: #{tpu_custom_call.1} parent=5 // pred_check
        %p230 = pneg %p229
      $region30: #{tpu_custom_call.1} parent=5 // pred_check_branch
        %232 = sbr.rel (%p230) target = $region32
      $region31: #{tpu_custom_call.1} parent=5 // pred_region
        // Predicated region
        $region33: #{tpu_custom_call.1} parent=31 // pred_check
          %p233 = pneg %p56
        $region34: #{tpu_custom_call.1} parent=31 // pred_check_branch
          %235 = sbr.rel (%p233) target = $region36
        $region35: #{tpu_custom_call.1} parent=31 // pred_region
          %s236 = sand.u32 %s46, 1
          %s237 = scalar_lea.sflag [#allocation3], %s236
          %s238 = sand.u32 %s46, 1
          %s239 = smul.addr %s238, 8
          %s240 = scalar_lea.vmem [#allocation2], %s239
          %s242 = ssub.s32 128, 128
          %243 = vsyncadd %s237, %s242
          %s244 = smul.addr %s29, 2
          %s245 = sadd.s32 %s30, %s244
          %s246 = smul.addr %s245, 128
          %s247 = scalar_lea.hbm %s0, %s246
          %s249 = sshll.u32 %s240, 4
          %s250 = int_to_ptr.vmem [resolvable:$true] %s249
          %252 = dma.hbm_to_vmem [thread:$0]  %s247, 128, %s250, %s237
        $region36: #{tpu_custom_call.1} parent=31 // pred_fallthru
          _
      $region32: #{tpu_custom_call.1} parent=5 // pred_fallthru
        _
      %p253 = scmp.le.s32.totalorder 1, %s22
      %p254 = scmp.lt.s32.totalorder %s22, 5
      %p255 = pnand %p253, %p254
      %p256 = pneg %p255
      // Predicated region
      $region37: #{tpu_custom_call.1} parent=5 // pred_check
        _
      $region38: #{tpu_custom_call.1} parent=5 // pred_check_branch
        %258 = sbr.rel (%p255) target = $region40
      $region39: #{tpu_custom_call.1} parent=5 // pred_region
        %s259 = ssub.s32 %s22, 1
        %s260 = sand.u32 %s49, 1
        %s261 = scalar_lea.sflag [#allocation3], %s260
        %s262 = sand.u32 %s49, 1
        %s263 = smul.addr %s262, 8
        %s264 = scalar_lea.vmem [#allocation2], %s263
        // Predicated region
        $region41: #{tpu_custom_call.1} parent=39 // pred_check
          %p265 = pneg %p62
        $region42: #{tpu_custom_call.1} parent=39 // pred_check_branch
          %267 = sbr.rel (%p265) target = $region44
        $region43: #{tpu_custom_call.1} parent=39 // pred_region
          %268 = dma.done %s261, 128
        $region44: #{tpu_custom_call.1} parent=39 // pred_fallthru
          _
        %s269 = sand.u32 %s49, 1
        %s270 = scalar_lea.sflag [#allocation3], %s269
        %s271 = sand.u32 %s49, 1
        %s272 = smul.addr %s271, 8
        %s273 = scalar_lea.vmem [#allocation2], %s272
        %p274 = pneg %p62
        %p275 = pneg %p59
        %p276 = pneg %p83
        %p277 = pneg %p80
        %p278 = pneg %p104
        %p279 = pneg %p101
        %p280 = pneg %p125
        %p281 = pneg %p122
        %p282 = pneg %p146
        %p283 = pneg %p143
        %p284 = pneg %p174
        %p285 = pneg %p171
        %s286 = sand.u32 %s161, 1
        %s287 = scalar_lea.sflag [#allocation4], %s286
        %s288 = sand.u32 %s161, 1
        %s289 = scalar_lea.vmem [#allocation5], %s288
        %p290 = pneg %p202
        %p291 = pneg %p199
        %s292 = sand.u32 %s189, 1
        %s293 = scalar_lea.sflag [#allocation7], %s292
        %s294 = sand.u32 %s189, 1
        %s295 = smul.addr %s294, 8
        %s296 = scalar_lea.vmem [#allocation6], %s295
        %v299 = vld [vmem:[%s264] sm:$0xff]
        %v300 = vpack.c.bf16 %v299, %v299
        %v301 = vld [vmem:[%s1] sm:$0x1]
        %v302 = vld [vmem:[%s2] sm:$0x3]
        %304 = vset.pattern.permute.xlu0 0
        %305 = vperm.xlu0 %304, %v302
        %v306 = vpop.permute.xlu0 %305
        %vm308 = vcmask 64512
        %v310 = vsel %vm308, %v301, 0
        %vm312 = vcmask 1043456
        %v314 = vsel %vm312, %v300, 0
        %316 = vmatprep.subr.bf16.mxu0 0
        %317 = vmatpush1.bf16.msra.mxu0 0
        %318 = vmatprep.subr.bf16.mxu0 0
        %319 = vmatpush1.bf16.msra.mxu0 0
        %320 = vmatprep.subr.bf16.mxu0 0
        %321 = vmatpush1.bf16.msra.mxu0 0
        %322 = vmatprep.subr.bf16.mxu0 0
        %323 = vmatpush1.bf16.msra.mxu0 0
        %324 = vmatprep.subr.bf16.mxu0 0
        %325 = vmatpush1.bf16.msra.mxu0 0
        %326 = vmatprep.subr.bf16.mxu0 0
        %327 = vmatpush1.bf16.msra.mxu0 0
        %328 = vmatprep.subr.bf16.mxu0 0
        %329 = vmatpush1.bf16.msra.mxu0 0
        %330 = vmatprep.subr.bf16.mxu0 0
        %331 = vmatpush1.bf16.msra.mxu0 %v314
        %332 = vmatprep.subr.bf16.mxu0 0
        %333 = vmatpush2.bf16.msra.mxu0 0
        %334 = vmatprep.subr.bf16.mxu0 0
        %335 = vmatpush2.bf16.msra.mxu0 0
        %336 = vmatprep.subr.bf16.mxu0 0
        %337 = vmatpush2.bf16.msra.mxu0 0
        %338 = vmatprep.subr.bf16.mxu0 0
        %339 = vmatpush2.bf16.msra.mxu0 0
        %340 = vmatprep.subr.bf16.mxu0 0
        %341 = vmatpush2.bf16.msra.mxu0 0
        %342 = vmatprep.subr.bf16.mxu0 0
        %343 = vmatpush2.bf16.msra.mxu0 0
        %344 = vmatprep.subr.bf16.mxu0 0
        %345 = vmatpush2.bf16.msra.mxu0 0
        %346 = vmatprep.subr.bf16.mxu0 0
        %347 = vmatpush2.bf16.msra.mxu0 0
        %348 = vmatprep.mubr.bf16.mxu0 0
        %349 = vmatmul.mubr.bf16.gmra.mxu0 %v310
        %v350 = vpop.f32.mrf.mxu0
        %v351 = vadd.f32 %v306, %v350
        %v352 = vpop.f32.mrf.mxu0
        %v353 = vpop.f32.mrf.mxu0
        %v354 = vpop.f32.mrf.mxu0
        %355 = vdwg.mxu0
        %v356 = vld [vmem:[%s3] sm:$0xf]
        %v357 = vld [vmem:[%s4] sm:$0xff]
        %359 = vset.pattern.permute.xlu0 0
        %360 = vperm.xlu0 %359, %v357
        %v361 = vpop.permute.xlu0 %360
        %v364 = vsel %vm308, %v356, 0
        %366 = vmatprep.subr.bf16.mxu0 0
        %367 = vmatpush1.bf16.msra.mxu0 0
        %368 = vmatprep.subr.bf16.mxu0 0
        %369 = vmatpush1.bf16.msra.mxu0 0
        %370 = vmatprep.subr.bf16.mxu0 0
        %371 = vmatpush1.bf16.msra.mxu0 0
        %372 = vmatprep.subr.bf16.mxu0 0
        %373 = vmatpush1.bf16.msra.mxu0 0
        %374 = vmatprep.subr.bf16.mxu0 0
        %375 = vmatpush1.bf16.msra.mxu0 0
        %376 = vmatprep.subr.bf16.mxu0 0
        %377 = vmatpush1.bf16.msra.mxu0 0
        %378 = vmatprep.subr.bf16.mxu0 0
        %379 = vmatpush1.bf16.msra.mxu0 0
        %380 = vmatprep.subr.bf16.mxu0 0
        %381 = vmatpush1.bf16.msra.mxu0 %v314
        %382 = vmatprep.subr.bf16.mxu0 0
        %383 = vmatpush2.bf16.msra.mxu0 0
        %384 = vmatprep.subr.bf16.mxu0 0
        %385 = vmatpush2.bf16.msra.mxu0 0
        %386 = vmatprep.subr.bf16.mxu0 0
        %387 = vmatpush2.bf16.msra.mxu0 0
        %388 = vmatprep.subr.bf16.mxu0 0
        %389 = vmatpush2.bf16.msra.mxu0 0
        %390 = vmatprep.subr.bf16.mxu0 0
        %391 = vmatpush2.bf16.msra.mxu0 0
        %392 = vmatprep.subr.bf16.mxu0 0
        %393 = vmatpush2.bf16.msra.mxu0 0
        %394 = vmatprep.subr.bf16.mxu0 0
        %395 = vmatpush2.bf16.msra.mxu0 0
        %396 = vmatprep.subr.bf16.mxu0 0
        %397 = vmatpush2.bf16.msra.mxu0 0
        %398 = vmatprep.mubr.bf16.mxu0 0
        %399 = vmatmul.mubr.bf16.gmra.mxu0 %v364
        %v400 = vpop.f32.mrf.mxu0
        %v401 = vadd.f32 %v361, %v400
        %v402 = vpop.f32.mrf.mxu0
        %v403 = vpop.f32.mrf.mxu0
        %v404 = vpop.f32.mrf.mxu0
        %405 = vdwg.mxu0
        %v406 = vpack.c.bf16 %v351, %v351
        %407 = vst [vmem:[%s289] sm:$0x1] %v406
        %v408 = vpack.c.bf16 %v401, %v401
        %v411 = vsel %vm312, %v408, 1065369472
        %v413 = vunpack.c.l.b16 %v411
        %v414 = vunpack.c.h.b16 %v411
        %v415 = vpack.c.b16 %v413, %v413
        %v416 = vpack.c.b16 %v414, %v414
        %419 = vst [vmem:[%s296] sm:$0xf] %v415
        %420 = vst [vmem:[%s296 + $0x4] sm:$0xf] %v416
        %s421 = sand.u32 %s161, 1
        %s422 = scalar_lea.sflag [#allocation4], %s421
        %s423 = sand.u32 %s161, 1
        %s424 = scalar_lea.vmem [#allocation5], %s423
        %s425 = sand.u32 %s189, 1
        %s426 = scalar_lea.sflag [#allocation7], %s425
        %s427 = sand.u32 %s189, 1
        %s428 = smul.addr %s427, 8
        %s429 = scalar_lea.vmem [#allocation6], %s428
        // Predicated region
        $region45: #{tpu_custom_call.1} parent=39 // pred_check
          %p430 = pneg %p171
        $region46: #{tpu_custom_call.1} parent=39 // pred_check_branch
          %432 = sbr.rel (%p430) target = $region48
        $region47: #{tpu_custom_call.1} parent=39 // pred_region
          %s434 = ssub.s32 16, 16
          %435 = vsyncadd %s422, %s434
          %s436 = smul.addr %s31, 2
          %s437 = sadd.s32 %s32, %s436
          %s438 = smul.addr %s437, 16
          %s439 = scalar_lea.hbm %s5, %s438
          %s441 = sshll.u32 %s424, 4
          %s442 = int_to_ptr.vmem [resolvable:$true] %s441
          %444 = dma.vmem_to_hbm [thread:$0]  %s442, 16, %s439, %s422
        $region48: #{tpu_custom_call.1} parent=39 // pred_fallthru
          _
        // Predicated region
        $region49: #{tpu_custom_call.1} parent=39 // pred_check
          %p445 = pneg %p199
        $region50: #{tpu_custom_call.1} parent=39 // pred_check_branch
          %447 = sbr.rel (%p445) target = $region52
        $region51: #{tpu_custom_call.1} parent=39 // pred_region
          %s449 = ssub.s32 128, 128
          %450 = vsyncadd %s426, %s449
          %s451 = smul.addr %s31, 4
          %s452 = sadd.s32 %s32, %s451
          %s453 = smul.addr %s452, 64
          %s454 = scalar_lea.hbm %s6, %s453
          %s455 = sshll.u32 %s429, 4
          %s456 = int_to_ptr.vmem [resolvable:$true] %s455
          %461 = dma.vmem_to_hbm [thread:$0]  %s456, 128, %s454, %s426, 64, 128, 4
        $region52: #{tpu_custom_call.1} parent=39 // pred_fallthru
          _
      $region40: #{tpu_custom_call.1} parent=5 // pred_fallthru
        _
      %p462 = scmp.le.s32.totalorder 2, %s22
      // Predicated region
      $region53: #{tpu_custom_call.1} parent=5 // pred_check
        %p463 = pneg %p462
      $region54: #{tpu_custom_call.1} parent=5 // pred_check_branch
        %465 = sbr.rel (%p463) target = $region56
      $region55: #{tpu_custom_call.1} parent=5 // pred_region
        %s466 = ssub.s32 %s22, 2
        // Predicated region
        $region57: #{tpu_custom_call.1} parent=55 // pred_check
          %p467 = pneg %p177
        $region58: #{tpu_custom_call.1} parent=55 // pred_check_branch
          %469 = sbr.rel (%p467) target = $region60
        $region59: #{tpu_custom_call.1} parent=55 // pred_region
          %s470 = sand.u32 %s162, 1
          %s471 = scalar_lea.sflag [#allocation4], %s470
          %s472 = sand.u32 %s162, 1
          %s473 = scalar_lea.vmem [#allocation5], %s472
          %474 = dma.done %s471, 16
        $region60: #{tpu_custom_call.1} parent=55 // pred_fallthru
          _
        // Predicated region
        $region61: #{tpu_custom_call.1} parent=55 // pred_check
          %p475 = pneg %p205
        $region62: #{tpu_custom_call.1} parent=55 // pred_check_branch
          %477 = sbr.rel (%p475) target = $region64
        $region63: #{tpu_custom_call.1} parent=55 // pred_region
          %s478 = sand.u32 %s190, 1
          %s479 = scalar_lea.sflag [#allocation7], %s478
          %s480 = sand.u32 %s190, 1
          %s481 = smul.addr %s480, 8
          %s482 = scalar_lea.vmem [#allocation6], %s481
          %483 = dma.done %s479, 128
        $region64: #{tpu_custom_call.1} parent=55 // pred_fallthru
          _
      $region56: #{tpu_custom_call.1} parent=5 // pred_fallthru
        _
    $region6: #{tpu_custom_call.1} parent=1 // loop_footer
      %s26 = sadd.s32 1, %s22
    $region7: #{tpu_custom_call.1} parent=1 // loop_footer_branch
      %21 = sbr.rel target = $region3
    $region8: #{tpu_custom_call.1} parent=1 // loop_exit
      _
    %484 = vsyncpa [#allocation3], 1
    %s485 = scalar_lea.sflag [#allocation3], 1
    %486 = vsyncpa %s485, 1
    %487 = vsyncpa [#allocation4], 1
    %s488 = scalar_lea.sflag [#allocation4], 1
    %489 = vsyncpa %s488, 1
    %490 = vsyncpa [#allocation7], 1
    %s491 = scalar_lea.sflag [#allocation7], 1
    %492 = vsyncpa %s491, 1

</llo_original>
